<compile_context>
chip_gen: v7x
topology: tpu7x:2x2x1
jax: 0.10.0
libtpu: 0.0.40
codegen_flags: <defaults>
</compile_context>

<pallas_src>
import functools

import jax
import jax.numpy as jnp
from jax import lax
from jax.experimental import pallas as pl
from jax.experimental.pallas import tpu as pltpu


def _round_up(x, m):
    return ((x + m - 1) // m) * m


def _patch_embed_kernel(x_ref, w_ref, p_ref, o_ref, *, eps, e_real, e_pad):
    # x_ref: (tm, K)       patch rows (matmul dtype, e.g. bf16)
    # w_ref: (K, Ep)       projection weight, lane-padded to multiple of 128
    # p_ref: (3, Ep) f32   [conv bias; LN gamma; LN beta], zero in padded lanes
    # o_ref: (tm, Ep)
    y = jnp.dot(x_ref[...], w_ref[...], preferred_element_type=jnp.float32)
    p = p_ref[...]
    y = y + p[0:1, :]                       # conv bias (zero in padded lanes)

    inv_e = 1.0 / float(e_real)
    # Padded lanes have zero weight columns and zero bias => y == 0 there, so
    # the plain lane-sum already equals the sum over the real embed dim.
    mean = jnp.sum(y, axis=-1, keepdims=True) * inv_e
    cent = y - mean
    ssq = jnp.sum(cent * cent, axis=-1, keepdims=True)
    n_pad = e_pad - e_real
    if n_pad:
        # In padded lanes cent == -mean, so they add n_pad * mean^2 to the
        # sum of squares; subtract that scalar column instead of masking the
        # whole (tm, E_pad) tile.
        ssq = ssq - float(n_pad) * (mean * mean)
    var = ssq * inv_e
    y_hat = cent * lax.rsqrt(var + eps)     # rsqrt -> EUP slot
    # gamma/beta are zero-padded, so padded output lanes land at exactly 0.
    o_ref[...] = (y_hat * p[1:2, :] + p[2:3, :]).astype(o_ref.dtype)


@functools.partial(
    jax.jit,
    static_argnames=("patch_size", "eps", "row_tile", "matmul_dtype",
                     "vmem_budget_bytes"))
def patch_embed_forward(x, conv_w, conv_b, ln_g, ln_b, patch_size, *, eps=1e-5,
                        row_tile=512, matmul_dtype=jnp.bfloat16,
                        vmem_budget_bytes=32 * 1024 * 1024):
    """x: (B, C, H, W) NCHW.  Returns (out (B, N, E), (Hp, Wp))."""
    B, C, H, W = x.shape
    ph, pw = patch_size
    assert H % ph == 0 and W % pw == 0
    Hp, Wp = H // ph, W // pw
    N = Hp * Wp
    E = conv_w.shape[0]
    K = C * ph * pw
    M = B * N
    out_dtype = x.dtype
    E_pad = _round_up(E, 128)

    # NCHW -> (B*N, K) patch rows, flattened (c, kh, kw) to match Conv2d's
    # (E, C, kh, kw) weight layout.  Cast to the matmul dtype in the same
    # (jitted) expression so XLA fuses transpose + convert into one copy.
    # TODO(synk): fold the patch gather into the kernel (or accept an NHWC /
    # pre-patched layout upstream) to remove this HBM round-trip entirely.
    xp = x.reshape(B, C, Hp, ph, Wp, pw)
    xp = jnp.transpose(xp, (0, 2, 4, 1, 3, 5))          # (B, Hp, Wp, C, ph, pw)
    rows = xp.reshape(M, K).astype(matmul_dtype)

    # Weight (K, E_pad) and stacked [bias; gamma; beta] (3, E_pad).
    w_mat = conv_w.reshape(E, K).T.astype(matmul_dtype)
    params = jnp.stack([conv_b, ln_g, ln_b]).astype(jnp.float32)
    if E_pad != E:
        w_mat = jnp.pad(w_mat, ((0, 0), (0, E_pad - E)))
        params = jnp.pad(params, ((0, 0), (0, E_pad - E)))

    # --- pick the largest M-tile that fits the VMEM budget -------------------
    in_sz = jnp.dtype(matmul_dtype).itemsize
    out_sz = jnp.dtype(out_dtype).itemsize
    sub = 16 if in_sz < 4 else 8                        # bf16 sublane minimum
    tm = min(_round_up(row_tile, sub), _round_up(M, sub))

    def working_set(t):
        return (2 * t * K * in_sz            # double-buffered input rows
                + 2 * t * E_pad * out_sz     # double-buffered output tile
                + 2 * K * E_pad * in_sz      # weight (resident)
                + 2 * 3 * E_pad * 4)         # bias/gamma/beta (resident)

    while tm > sub and working_set(tm) > vmem_budget_bytes:
        tm = _round_up(tm // 2, sub)

    grid_m = pl.cdiv(M, tm)
    M_pad = grid_m * tm
    if M_pad != M:
        rows = jnp.pad(rows, ((0, M_pad - M), (0, 0)))

    # Working set already includes double buffering; add headroom, cap so the
    # scoped request stays safe on v7x (64 MiB physical VMEM).
    vmem_limit = int(min(max(working_set(tm) + (4 << 20), 16 << 20), 48 << 20))

    out_flat = pl.pallas_call(
        functools.partial(_patch_embed_kernel, eps=eps, e_real=E, e_pad=E_pad),
        out_shape=jax.ShapeDtypeStruct((M_pad, E_pad), out_dtype),
        grid_spec=pltpu.PrefetchScalarGridSpec(
            num_scalar_prefetch=0,
            grid=(grid_m,),
            in_specs=[
                pl.BlockSpec((tm, K), lambda i: (i, 0)),
                pl.BlockSpec((K, E_pad), lambda i: (0, 0)),
                pl.BlockSpec((3, E_pad), lambda i: (0, 0)),
            ],
            out_specs=pl.BlockSpec((tm, E_pad), lambda i: (i, 0)),
        ),
        compiler_params=pltpu.CompilerParams(
            dimension_semantics=("parallel",),
            vmem_limit_bytes=vmem_limit),
    )(rows, w_mat, params)

    out = out_flat[:M, :E].reshape(B, N, E)
    return out, (Hp, Wp)


# ----------------------------- references -----------------------------------

def _patch_rows(x, patch_size):
    B, C, H, W = x.shape
    ph, pw = patch_size
    Hp, Wp = H // ph, W // pw
    xp = x.reshape(B, C, Hp, ph, Wp, pw)
    xp = jnp.transpose(xp, (0, 2, 4, 1, 3, 5))
    return xp.reshape(B * Hp * Wp, C * ph * pw), (Hp, Wp)


def reference_matmul(x, conv_w, conv_b, ln_g, ln_b, patch_size, *, eps=1e-5,
                     matmul_dtype=jnp.bfloat16):
    """Pure-JAX reference of the exact kernel math (bf16 matmul, f32 LN)."""
    B = x.shape[0]
    E = conv_w.shape[0]
    rows, (Hp, Wp) = _patch_rows(x, patch_size)
    w_mat = conv_w.reshape(E, -1).T
    y = jnp.dot(rows.astype(matmul_dtype), w_mat.astype(matmul_dtype),
                preferred_element_type=jnp.float32)
    y = y + conv_b.astype(jnp.float32)
    mean = jnp.mean(y, axis=-1, keepdims=True)
    var = jnp.mean((y - mean) ** 2, axis=-1, keepdims=True)
    y = (y - mean) * lax.rsqrt(var + eps)
    y = y * ln_g.astype(jnp.float32) + ln_b.astype(jnp.float32)
    return y.reshape(B, Hp * Wp, E), (Hp, Wp)


def reference_conv_f32(x, conv_w, conv_b, ln_g, ln_b, patch_size, eps=1e-5):
    """Full-precision reference mirroring the PyTorch forward (conv path)."""
    ph, pw = patch_size
    y = lax.conv_general_dilated(
        x.astype(jnp.float32), conv_w.astype(jnp.float32),
        window_strides=(ph, pw), padding="VALID",
        dimension_numbers=("NCHW", "OIHW", "NCHW"))
    y = y + conv_b.astype(jnp.float32)[None, :, None, None]
    B, E, Hp, Wp = y.shape
    y = y.reshape(B, E, Hp * Wp).transpose(0, 2, 1)      # (B, N, E)
    mean = jnp.mean(y, axis=-1, keepdims=True)
    var = jnp.mean((y - mean) ** 2, axis=-1, keepdims=True)
    y = (y - mean) / jnp.sqrt(var + eps)
    y = y * ln_g.astype(jnp.float32) + ln_b.astype(jnp.float32)
    return y, (Hp, Wp)


if __name__ == "__main__":
    # Small shapes consistent with the module: img_size=16, patch_size=4,
    # in_chans=4, embed_dim=32  ->  num_patches = 16 per image.
    B, C, H, W = 2, 4, 16, 16
    patch = (4, 4)
    embed_dim = 32

    key = jax.random.PRNGKey(0)
    k1, k2, k3 = jax.random.split(key, 3)
    x = jax.random.normal(k1, (B, C, H, W), dtype=jnp.float32)
    conv_w = 0.05 * jax.random.normal(
        k2, (embed_dim, C, patch[0], patch[1]), dtype=jnp.float32)
    conv_b = 0.01 * jax.random.normal(k3, (embed_dim,), dtype=jnp.float32)
    ln_g = jnp.ones((embed_dim,), dtype=jnp.float32)
    ln_b = jnp.zeros((embed_dim,), dtype=jnp.float32)

    out, (Hp, Wp) = patch_embed_forward(x, conv_w, conv_b, ln_g, ln_b, patch)
    out = jax.block_until_ready(out)

    assert out.shape == (B, Hp * Wp, embed_dim)
    assert (Hp, Wp) == (H // patch[0], W // patch[1])

    # Tight check against a pure-JAX reference of the same math (bf16 matmul,
    # f32 accumulate + f32 LayerNorm).
    ref_bf16, _ = reference_matmul(x, conv_w, conv_b, ln_g, ln_b, patch)
    assert jnp.allclose(out, ref_bf16.astype(out.dtype), atol=1e-4, rtol=1e-4)

    # Looser check against the full-precision conv path (validates patch
    # gather order / bias / LN semantics end to end).
    ref_f32, (Hr, Wr) = reference_conv_f32(x, conv_w, conv_b, ln_g, ln_b, patch)
    assert (Hp, Wp) == (Hr, Wr)
    assert jnp.allclose(out, ref_f32.astype(out.dtype), atol=3e-2, rtol=3e-2)

    print("KERNEL_OK")
</pallas_src>

<mosaic_0001>
module attributes {stable_mosaic.version = 11 : i64} {
  func.func @_patch_embed_kernel(%arg0: i32, %arg1: memref<32x64xbf16, #tpu.memory_space<vmem>>, %arg2: memref<64x128xbf16, #tpu.memory_space<vmem>>, %arg3: memref<3x128xf32, #tpu.memory_space<vmem>>, %arg4: memref<32x128xf32, #tpu.memory_space<vmem>>) attributes {dimension_semantics = [#tpu.dimension_semantics<parallel>], iteration_bounds = array<i64: 1>, scalar_prefetch = 0 : i64, scratch_operands = 0 : i64, tpu.core_type = #tpu.core_type<tc>, window_params = [{transform_indices = @transform_0, window_bounds = array<i64: 32, 64>}, {pipeline_mode = #tpu.pipeline_mode<synchronous>, transform_indices = @transform_1, window_bounds = array<i64: 64, 128>}, {pipeline_mode = #tpu.pipeline_mode<synchronous>, transform_indices = @transform_2, window_bounds = array<i64: 3, 128>}, {transform_indices = @transform_3, window_bounds = array<i64: 32, 128>}]} {
    %c0 = arith.constant 0 : index
    %c0_0 = arith.constant 0 : index
    %0 = vector.load %arg1[%c0, %c0_0] : memref<32x64xbf16, #tpu.memory_space<vmem>>, vector<32x64xbf16>
    %c0_1 = arith.constant 0 : index
    %c0_2 = arith.constant 0 : index
    %1 = vector.load %arg2[%c0_1, %c0_2] : memref<64x128xbf16, #tpu.memory_space<vmem>>, vector<64x128xbf16>
    %cst = arith.constant dense<0.000000e+00> : vector<32x128xf32>
    %2 = tpu.matmul %0, %1, %cst {dimension_numbers = #tpu.dot_dimension_numbers<[1], [0], [0], [1], [0, 0, 1, 1], [], []>} : vector<32x64xbf16>, vector<64x128xbf16>, vector<32x128xf32> -> vector<32x128xf32>
    %c0_3 = arith.constant 0 : index
    %c0_4 = arith.constant 0 : index
    %3 = vector.load %arg3[%c0_3, %c0_4] : memref<3x128xf32, #tpu.memory_space<vmem>>, vector<3x128xf32>
    %4 = vector.extract_strided_slice %3 {offsets = [0, 0], sizes = [1, 128], strides = [1, 1]} : vector<3x128xf32> to vector<1x128xf32>
    %5 = vector.broadcast %4 : vector<1x128xf32> to vector<32x128xf32>
    %6 = arith.addf %2, %5 : vector<32x128xf32>
    %cst_5 = arith.constant dense<0.000000e+00> : vector<32xf32>
    %7 = vector.multi_reduction <add>, %6, %cst_5 [1] : vector<32x128xf32> to vector<32xf32>
    %8 = vector.shape_cast %7 : vector<32xf32> to vector<32x1xf32>
    %cst_6 = arith.constant 3.125000e-02 : f32
    %9 = vector.broadcast %cst_6 : f32 to vector<32x1xf32>
    %10 = arith.mulf %8, %9 : vector<32x1xf32>
    %11 = vector.broadcast %10 : vector<32x1xf32> to vector<32x128xf32>
    %12 = arith.subf %6, %11 : vector<32x128xf32>
    %13 = arith.mulf %12, %12 : vector<32x128xf32>
    %cst_7 = arith.constant dense<0.000000e+00> : vector<32xf32>
    %14 = vector.multi_reduction <add>, %13, %cst_7 [1] : vector<32x128xf32> to vector<32xf32>
    %15 = vector.shape_cast %14 : vector<32xf32> to vector<32x1xf32>
    %16 = arith.mulf %10, %10 : vector<32x1xf32>
    %cst_8 = arith.constant 9.600000e+01 : f32
    %17 = vector.broadcast %cst_8 : f32 to vector<32x1xf32>
    %18 = arith.mulf %17, %16 : vector<32x1xf32>
    %19 = arith.subf %15, %18 : vector<32x1xf32>
    %cst_9 = arith.constant 3.125000e-02 : f32
    %20 = vector.broadcast %cst_9 : f32 to vector<32x1xf32>
    %21 = arith.mulf %19, %20 : vector<32x1xf32>
    %cst_10 = arith.constant 9.99999974E-6 : f32
    %22 = vector.broadcast %cst_10 : f32 to vector<32x1xf32>
    %23 = arith.addf %21, %22 : vector<32x1xf32>
    %24 = math.rsqrt %23 : vector<32x1xf32>
    %25 = vector.broadcast %24 : vector<32x1xf32> to vector<32x128xf32>
    %26 = arith.mulf %12, %25 : vector<32x128xf32>
    %27 = vector.extract_strided_slice %3 {offsets = [1, 0], sizes = [1, 128], strides = [1, 1]} : vector<3x128xf32> to vector<1x128xf32>
    %28 = vector.broadcast %27 : vector<1x128xf32> to vector<32x128xf32>
    %29 = arith.mulf %26, %28 : vector<32x128xf32>
    %30 = vector.extract_strided_slice %3 {offsets = [2, 0], sizes = [1, 128], strides = [1, 1]} : vector<3x128xf32> to vector<1x128xf32>
    %31 = vector.broadcast %30 : vector<1x128xf32> to vector<32x128xf32>
    %32 = arith.addf %29, %31 : vector<32x128xf32>
    %c0_11 = arith.constant 0 : index
    %c0_12 = arith.constant 0 : index
    %33 = vector.load %arg4[%c0_11, %c0_12] : memref<32x128xf32, #tpu.memory_space<vmem>>, vector<32x128xf32>
    tpu.vector_store %arg4[%c0_11, %c0_12], %32 {strides = array<i32>} : memref<32x128xf32, #tpu.memory_space<vmem>>, vector<32x128xf32>,
    return
  }
  func.func @transform_0(%arg0: i32) -> (i32, i32) {
    %c0_i32 = arith.constant 0 : i32
    %c0_i32_0 = arith.constant 0 : i32
    return %arg0, %c0_i32 : i32, i32
  }
  func.func @transform_1(%arg0: i32) -> (i32, i32) {
    %c0_i32 = arith.constant 0 : i32
    %c0_i32_0 = arith.constant 0 : i32
    %c0_i32_1 = arith.constant 0 : i32
    return %c0_i32, %c0_i32_0 : i32, i32
  }
  func.func @transform_2(%arg0: i32) -> (i32, i32) {
    %c0_i32 = arith.constant 0 : i32
    %c0_i32_0 = arith.constant 0 : i32
    %c0_i32_1 = arith.constant 0 : i32
    return %c0_i32, %c0_i32_0 : i32, i32
  }
  func.func @transform_3(%arg0: i32) -> (i32, i32) {
    %c0_i32 = arith.constant 0 : i32
    %c0_i32_0 = arith.constant 0 : i32
    return %arg0, %c0_i32 : i32, i32
  }
}

</mosaic_0001>

<llo_original>
// kernel: patch_embed_forward.1
$region0: #{patch_embed_forward.1}
  #allocation0 [shape = 'u32[]', space=smem, size = 0x4, offset = 0x4, fixed_abs, tag = 'smem constant byte address 0x4 - core index']
  #allocation1 [shape = 'u32[144,128]{1,0:T(1,128)}', space=vmem, size = 0x12000, scoped, tag = 'internal scratch']
  %s0 = inlined_call_operand.vmem [shape: bf16[32,64], index: 0, kind: input, shape index: {}]
  %s1 = inlined_call_operand.vmem [shape: bf16[64,128], index: 1, kind: input, shape index: {}]
  %s2 = inlined_call_operand.vmem [shape: f32[3,128], index: 2, kind: input, shape index: {}]
  %s3 = inlined_call_operand.hbm [shape: f32[32,128], index: 3, kind: output, shape index: {}]
  %s4 = sld [smem:[#allocation0]]
  $region22: #{patch_embed_forward.1} parent=0
    _
  %s6 = ssub.s32 1, %s4
  %s7 = scalar_select 0, %s6, %s4
  $region1: #{patch_embed_forward.1} parent=0
    #allocation2 [shape = 'u8[16384]{0}', space=vmem, size = 0x4000, scoped, tag = 'output window, operand 0, single buffered']
    #allocation3 [shape = 's32[1]{0}', space=sflag, size = 0x4, scoped, tag = 'scoped memory for patch_embed_forward.1']
    %8 = vsyncpa [#allocation3], 0
    // Predicated region
    $region2: #{patch_embed_forward.1} parent=1 // pred_check
      _
    $region3: #{patch_embed_forward.1} parent=1 // pred_check_branch
      %10 = sbr.rel (0) target = $region5
    $region4: #{patch_embed_forward.1} parent=1 // pred_region
      _
    $region5: #{patch_embed_forward.1} parent=1 // pred_fallthru
      _
    // Predicated region
    $region6: #{patch_embed_forward.1} parent=1 // pred_check
      _
    $region7: #{patch_embed_forward.1} parent=1 // pred_check_branch
      %12 = sbr.rel (0) target = $region9
    $region8: #{patch_embed_forward.1} parent=1 // pred_region
      _
    $region9: #{patch_embed_forward.1} parent=1 // pred_fallthru
      _
    // Predicated region
    $region10: #{patch_embed_forward.1} parent=1 // pred_check
      _
    $region11: #{patch_embed_forward.1} parent=1 // pred_check_branch
      %14 = sbr.rel (0) target = $region13
    $region12: #{patch_embed_forward.1} parent=1 // pred_region
      _
    $region13: #{patch_embed_forward.1} parent=1 // pred_fallthru
      _
    %v16 = vld [vmem:[%s0] sm:$0xf]
    %v17 = vld [vmem:[%s0 + $0x4] sm:$0xf]
    %v18 = vld [vmem:[%s0 + $0x8] sm:$0xf]
    %v19 = vld [vmem:[%s0 + $0xc] sm:$0xf]
    %v20 = vld [vmem:[%s1] sm:$0xf]
    %v21 = vld [vmem:[%s1 + $0x4] sm:$0xf]
    %v22 = vld [vmem:[%s1 + $0x8] sm:$0xf]
    %v23 = vld [vmem:[%s1 + $0xc] sm:$0xf]
    %v24 = vld [vmem:[%s1 + $0x10] sm:$0xf]
    %v25 = vld [vmem:[%s1 + $0x14] sm:$0xf]
    %v26 = vld [vmem:[%s1 + $0x18] sm:$0xf]
    %v27 = vld [vmem:[%s1 + $0x1c] sm:$0xf]
    %v28 = vld [vmem:[%s2] sm:$0x7]
    %v29 = vlaneseq
    %v30 = vshrl.u32 %v29, 7
    %v31 = vsub.s32 0, %v30
    %v32 = vrot.slane %v28, %v31
    %v37 = vunpack.c.l.b16 %v16
    %v38 = vunpack.c.l.b16 %v17
    %v39 = vunpack.c.l.b16 %v18
    %v40 = vunpack.c.l.b16 %v19
    %v41 = vpack.c.b16 %v38, %v37
    %v42 = vpack.c.b16 %v40, %v39
    %v51 = vunpack.c.l.b16 %v20
    %v52 = vunpack.c.l.b16 %v21
    %v53 = vunpack.c.l.b16 %v22
    %v54 = vunpack.c.l.b16 %v23
    %v55 = vunpack.c.l.b16 %v24
    %v56 = vunpack.c.l.b16 %v25
    %v57 = vunpack.c.l.b16 %v26
    %v58 = vunpack.c.l.b16 %v27
    %v59 = vpack.c.b16 %v52, %v51
    %v60 = vpack.c.b16 %v54, %v53
    %v61 = vpack.c.b16 %v56, %v55
    %v62 = vpack.c.b16 %v58, %v57
    %vm67 = vcmask 523264
    %v69 = vsel %vm67, %v41, 0
    %v72 = vsel %vm67, %v42, 0
    %74 = vmatprep.subr.bf16.mxu0 0
    %75 = vmatpush1.bf16.msra.mxu0 %v59
    %76 = vmatprep.subr.bf16.mxu0 0
    %77 = vmatpush1.bf16.msra.mxu0 %v60
    %78 = vmatprep.subr.bf16.mxu0 0
    %79 = vmatpush1.bf16.msra.mxu0 %v61
    %80 = vmatprep.subr.bf16.mxu0 0
    %81 = vmatpush1.bf16.msra.mxu0 %v62
    %82 = vmatprep.subr.bf16.mxu0 0
    %83 = vmatpush1.bf16.msra.mxu0 0
    %84 = vmatprep.subr.bf16.mxu0 0
    %85 = vmatpush1.bf16.msra.mxu0 0
    %86 = vmatprep.subr.bf16.mxu0 0
    %87 = vmatpush1.bf16.msra.mxu0 0
    %88 = vmatprep.subr.bf16.mxu0 0
    %89 = vmatpush1.bf16.msra.mxu0 0
    %90 = vmatprep.subr.bf16.mxu0 0
    %91 = vmatpush1.bf16.msra.mxu0 0
    %92 = vmatprep.subr.bf16.mxu0 0
    %93 = vmatpush1.bf16.msra.mxu0 0
    %94 = vmatprep.subr.bf16.mxu0 0
    %95 = vmatpush1.bf16.msra.mxu0 0
    %96 = vmatprep.subr.bf16.mxu0 0
    %97 = vmatpush1.bf16.msra.mxu0 0
    %98 = vmatprep.subr.bf16.mxu0 0
    %99 = vmatpush1.bf16.msra.mxu0 0
    %100 = vmatprep.subr.bf16.mxu0 0
    %101 = vmatpush1.bf16.msra.mxu0 0
    %102 = vmatprep.subr.bf16.mxu0 0
    %103 = vmatpush1.bf16.msra.mxu0 0
    %104 = vmatprep.subr.bf16.mxu0 0
    %105 = vmatpush1.bf16.msra.mxu0 0
    %106 = vmatprep.mubr.bf16.mxu0 0
    %107 = vmatmul.mubr.bf16.gmra.mrb[0].mxu0 %v69
    %v108 = vpop.f32.mrb[0].mxu0
    %v109 = vadd.f32 %v32, %v108
    %v110 = vpop.f32.mrb[0].mxu0
    %v111 = vpop.f32.mrb[0].mxu0
    %v112 = vadd.f32 %v32, %v111
    %v113 = vpop.f32.mrb[0].mxu0
    %114 = vmatprep.mubr.bf16.mxu0 0
    %115 = vmatmul.mubr.bf16.gmra.mrb[0].mxu0 %v72
    %v116 = vpop.f32.mrb[0].mxu0
    %v117 = vadd.f32 %v32, %v116
    %v118 = vpop.f32.mrb[0].mxu0
    %v119 = vpop.f32.mrb[0].mxu0
    %v120 = vadd.f32 %v32, %v119
    %v121 = vpop.f32.mrb[0].mxu0
    %122 = vdwg.mxu0
    %123 = vadd.xlane.f32.xlu0 %v109
    %v124 = vpop.xlane.xlu0 %123
    %125 = vadd.xlane.f32.xlu0 %v112
    %v126 = vpop.xlane.xlu0 %125
    %127 = vadd.xlane.f32.xlu0 %v117
    %v128 = vpop.xlane.xlu0 %127
    %129 = vadd.xlane.f32.xlu0 %v120
    %v130 = vpop.xlane.xlu0 %129
    %v131 = vmul.f32 %v124, 0.03125
    %v132 = vmul.f32 %v126, 0.03125
    %v133 = vmul.f32 %v128, 0.03125
    %v134 = vmul.f32 %v130, 0.03125
    %v135 = vsub.f32 %v109, %v131
    %v136 = vsub.f32 %v112, %v132
    %v137 = vsub.f32 %v117, %v133
    %v138 = vsub.f32 %v120, %v134
    %v139 = vmul.f32 %v135, %v135
    %v140 = vmul.f32 %v136, %v136
    %v141 = vmul.f32 %v137, %v137
    %v142 = vmul.f32 %v138, %v138
    %143 = vadd.xlane.f32.xlu0 %v139
    %v144 = vpop.xlane.xlu0 %143
    %145 = vadd.xlane.f32.xlu0 %v140
    %v146 = vpop.xlane.xlu0 %145
    %147 = vadd.xlane.f32.xlu0 %v141
    %v148 = vpop.xlane.xlu0 %147
    %149 = vadd.xlane.f32.xlu0 %v142
    %v150 = vpop.xlane.xlu0 %149
    %v151 = vmul.f32 %v131, %v131
    %v152 = vmul.f32 %v132, %v132
    %v153 = vmul.f32 %v133, %v133
    %v154 = vmul.f32 %v134, %v134
    %v155 = vmul.f32 %v151, 96.0
    %v156 = vmul.f32 %v152, 96.0
    %v157 = vmul.f32 %v153, 96.0
    %v158 = vmul.f32 %v154, 96.0
    %v159 = vsub.f32 %v144, %v155
    %v160 = vsub.f32 %v146, %v156
    %v161 = vsub.f32 %v148, %v157
    %v162 = vsub.f32 %v150, %v158
    %v163 = vmul.f32 %v159, 0.03125
    %v164 = vmul.f32 %v160, 0.03125
    %v165 = vmul.f32 %v161, 0.03125
    %v166 = vmul.f32 %v162, 0.03125
    %v167 = vadd.f32 %v163, 1e-05
    %v168 = vadd.f32 %v164, 1e-05
    %v169 = vadd.f32 %v165, 1e-05
    %v170 = vadd.f32 %v166, 1e-05
    %v171 = vrsqrt.pop %v167
    %v172 = vrsqrt.pop %v168
    %v173 = vrsqrt.pop %v169
    %v174 = vrsqrt.pop %v170
    %v175 = vmul.f32 %v135, %v171
    %v176 = vmul.f32 %v136, %v172
    %v177 = vmul.f32 %v137, %v173
    %v178 = vmul.f32 %v138, %v174
    %v179 = vlaneseq
    %v180 = vshrl.u32 %v179, 7
    %v181 = vsub.s32 1, %v180
    %v182 = vrot.slane %v28, %v181
    %v183 = vmul.f32 %v175, %v182
    %v184 = vmul.f32 %v176, %v182
    %v185 = vmul.f32 %v177, %v182
    %v186 = vmul.f32 %v178, %v182
    %v187 = vlaneseq
    %v188 = vshrl.u32 %v187, 7
    %v189 = vsub.s32 2, %v188
    %v190 = vrot.slane %v28, %v189
    %v191 = vadd.f32 %v183, %v190
    %v192 = vadd.f32 %v184, %v190
    %v193 = vadd.f32 %v185, %v190
    %v194 = vadd.f32 %v186, %v190
    %195 = vst [vmem:[#allocation2] sm:$0xff] %v191
    %196 = vst [vmem:[#allocation2 + $0x8] sm:$0xff] %v192
    %197 = vst [vmem:[#allocation2 + $0x10] sm:$0xff] %v193
    %198 = vst [vmem:[#allocation2 + $0x18] sm:$0xff] %v194
    // Predicated region
    $region14: #{patch_embed_forward.1} parent=1 // pred_check
      _
    $region15: #{patch_embed_forward.1} parent=1 // pred_check_branch
      %200 = sbr.rel (0) target = $region17
    $region16: #{patch_embed_forward.1} parent=1 // pred_region
      %s202 = ssub.s32 512, 512
      %203 = vsyncadd [#allocation3], %s202
      %s204 = sshll.u32 [#allocation2], 4
      %s205 = int_to_ptr.vmem [resolvable:$true] %s204
      %210 = dma.vmem_to_hbm [thread:$0]  %s205, 512, %s3, [#allocation3], 128, 128, 8
    $region17: #{patch_embed_forward.1} parent=1 // pred_fallthru
      _
    // Predicated region
    $region18: #{patch_embed_forward.1} parent=1 // pred_check
      _
    $region19: #{patch_embed_forward.1} parent=1 // pred_check_branch
      %212 = sbr.rel (0) target = $region21
    $region20: #{patch_embed_forward.1} parent=1 // pred_region
      %213 = dma.done [#allocation3], 512
    $region21: #{patch_embed_forward.1} parent=1 // pred_fallthru
      _
    %214 = vsyncpa [#allocation3], 1

</llo_original>
